<compile_context>
chip_gen: v7x
topology: tpu7x:2x2x1
jax: 0.10.0
libtpu: 0.0.40
codegen_flags: <defaults>
</compile_context>

<pallas_src>
import functools

import jax
import jax.numpy as jnp
import numpy as np
from jax.experimental import pallas as pl
from jax.experimental.pallas import tpu as pltpu

KH, KW = 3, 5                                       # ConvBlock2 kernel size
POOL_W = 4                                          # MaxPool2d((1, 4), stride=(1, 1))
DOWN_COEFF = (1.0 / 8, 3.0 / 8, 3.0 / 8, 1.0 / 8)   # fixed depthwise weights [1,3,3,1]/8
DOWN_STRIDE = 4
DOWN_PAD = 2


def _silu(a):
    # exp lands on the EUP; the divide stays on the reciprocal path.
    return a * pl.reciprocal(1.0 + jnp.exp(-a))


# ------------------------------ fused kernel ------------------------------- #

def _fused_kernel(x_ref, w1_ref, b1_ref, w2_ref, b2_ref, o_ref, *, cin, wp):
    """Whole Sebastian_Down2 forward for one batch element.

    x_ref : (1, H, W*Cin)         input, (width, channel) flattened into lanes
    w1_ref: (KH, Wp*Cin,  Wd*Cout) per-dh matrices folding downsample + conv1
                                   width taps + conv1 'same' width padding
    w2_ref: (KH, Wd*Cout, Wd*Cout) per-dh matrices for conv2 width taps + pad
    b*_ref: (1, Wd*Cout)           bias tiled over the output width
    o_ref : (1, H, Wd*Cout)        output, (width, channel) flattened into lanes
    """
    x2 = x_ref[0]                                   # (H, W*Cin)
    H = x2.shape[0]
    n_out = o_ref.shape[2]
    lp = wp * cin                                   # pooled width * Cin lanes

    # ---------------- stage 1: MaxPool2d((1,4), stride 1) -------------------
    # max of 4 lane-shifted slices (shift by Cin lanes per pool tap).
    y = x2[:, 0:lp]
    for j in range(1, POOL_W):
        y = jnp.maximum(y, x2[:, j * cin:j * cin + lp])

    # height 'same' padding (1,1); all width padding is folded into w1/w2.
    zr1 = jnp.zeros((1, lp), jnp.float32)
    yp = jnp.concatenate([zr1, y, zr1], axis=0)     # (H+2, Wp*Cin)

    # ------ stage 2+3: depthwise downsample + conv1 (3x5 'same') + SiLU -----
    # one MXU matmul per kernel row, accumulated in vregs.
    a1 = b1_ref[...]                                # (1, Wd*Cout), broadcasts
    for dh in range(KH):
        a1 = a1 + jnp.dot(yp[dh:dh + H, :], w1_ref[dh],
                          preferred_element_type=jnp.float32)
    a1 = _silu(a1)                                  # (H, Wd*Cout)

    # ---------------- stage 4: conv2 (3x5 'same') + SiLU --------------------
    zr2 = jnp.zeros((1, n_out), jnp.float32)
    ap = jnp.concatenate([zr2, a1, zr2], axis=0)    # (H+2, Wd*Cout)
    a2 = b2_ref[...]
    for dh in range(KH):
        a2 = a2 + jnp.dot(ap[dh:dh + H, :], w2_ref[dh],
                          preferred_element_type=jnp.float32)
    a2 = _silu(a2)                                  # (H, Wd*Cout)

    o_ref[0] = a2.astype(o_ref.dtype)               # single lane-dense store


# -------------------------- host-side weight folding ------------------------ #

def _fold_params(w1, b1, w2, b2, *, wp, wd, cin, cout):
    """Fold downsample + width taps + width padding into block-Toeplitz mats."""
    # Md[w', wq]: pooled-width -> downsampled-width matrix (zero pad folded in).
    md = np.zeros((wp, wd), np.float32)
    for k in range(POOL_W):
        for wq in range(wd):
            src = DOWN_STRIDE * wq + k - DOWN_PAD
            if 0 <= src < wp:
                md[src, wq] += DOWN_COEFF[k]
    # S[wq, dw, wdo]: conv width-tap selector with 'same' width padding folded.
    s = np.zeros((wd, KW, wd), np.float32)
    for wdo in range(wd):
        for dw in range(KW):
            q = wdo + dw - (KW // 2)
            if 0 <= q < wd:
                s[q, dw, wdo] = 1.0
    g = np.einsum('pq,qvd->pvd', md, s)             # (Wp, KW, Wd)

    w1f = w1.astype(jnp.float32)                    # (Cout, Cin, KH, KW)
    w2f = w2.astype(jnp.float32)                    # (Cout, Cout, KH, KW)
    # rows: src-width-major, channel-minor; cols: out-width-major, Cout-minor
    w1big = jnp.einsum('pvd,oihv->hpido', jnp.asarray(g), w1f)
    w1big = w1big.reshape(KH, wp * cin, wd * cout)
    w2big = jnp.einsum('qvd,omhv->hqmdo', jnp.asarray(s), w2f)
    w2big = w2big.reshape(KH, wd * cout, wd * cout)
    b1big = jnp.tile(b1.astype(jnp.float32), wd).reshape(1, wd * cout)
    b2big = jnp.tile(b2.astype(jnp.float32), wd).reshape(1, wd * cout)
    return w1big, b1big, w2big, b2big


# ------------------------------ host wrapper ------------------------------- #

def sebastian_down2(x_nchw, params):
    """Forward pass of Sebastian_Down2.  x: (B, C_in, H, W) NCHW, returns NCHW."""
    w1, b1, w2, b2 = params
    B, Cin, H, W = x_nchw.shape
    Cout = w1.shape[0]
    Wp = W - (POOL_W - 1)                                        # width after pool
    Wd = (Wp + 2 * DOWN_PAD - POOL_W) // DOWN_STRIDE + 1         # width after downsample
    Nw = Wd * Cout

    # NCHW -> (B, H, W*Cin): channels-last, width*channel flattened into lanes.
    x = jnp.transpose(x_nchw, (0, 2, 3, 1)).astype(jnp.float32).reshape(B, H, W * Cin)
    w1big, b1big, w2big, b2big = _fold_params(
        w1, b1, w2, b2, wp=Wp, wd=Wd, cin=Cin, cout=Cout)

    kernel = functools.partial(_fused_kernel, cin=Cin, wp=Wp)
    out2d = pl.pallas_call(
        kernel,
        out_shape=jax.ShapeDtypeStruct((B, H, Nw), jnp.float32),
        grid=(B,),
        in_specs=[
            pl.BlockSpec((1, H, W * Cin), lambda b: (b, 0, 0)),
            pl.BlockSpec((KH, Wp * Cin, Nw), lambda b: (0, 0, 0)),
            pl.BlockSpec((1, Nw), lambda b: (0, 0)),
            pl.BlockSpec((KH, Nw, Nw), lambda b: (0, 0, 0)),
            pl.BlockSpec((1, Nw), lambda b: (0, 0)),
        ],
        out_specs=pl.BlockSpec((1, H, Nw), lambda b: (b, 0, 0)),
        compiler_params=pltpu.CompilerParams(
            dimension_semantics=("parallel",)),      # batch steps shard across TCs
    )(x, w1big, b1big, w2big, b2big)

    out = out2d.reshape(B, H, Wd, Cout)              # layout glue only (no compute)
    return jnp.transpose(out, (0, 3, 1, 2))          # NHWC -> NCHW


# ------------------------------ pure-JAX reference ------------------------- #

def _reference(x, params):
    w1, b1, w2, b2 = params
    C = x.shape[1]
    y = jax.lax.reduce_window(x, -jnp.inf, jax.lax.max,
                              (1, 1, 1, POOL_W), (1, 1, 1, 1), "VALID")
    wdw = jnp.broadcast_to(
        jnp.array(DOWN_COEFF, jnp.float32)[None, None, None, :], (C, 1, 1, 4))
    z = jax.lax.conv_general_dilated(
        y, wdw, window_strides=(1, DOWN_STRIDE),
        padding=((0, 0), (DOWN_PAD, DOWN_PAD)),
        dimension_numbers=("NCHW", "OIHW", "NCHW"), feature_group_count=C,
        precision=jax.lax.Precision.HIGHEST)

    def conv_silu(u, w, b):
        v = jax.lax.conv_general_dilated(
            u, w, (1, 1), ((1, 1), (2, 2)),
            dimension_numbers=("NCHW", "OIHW", "NCHW"),
            precision=jax.lax.Precision.HIGHEST)
        v = v + b[None, :, None, None]
        return v * jax.nn.sigmoid(v)

    z = conv_silu(z, w1, b1)
    z = conv_silu(z, w2, b2)
    return z


# ----------------------------------- main ----------------------------------- #

if __name__ == "__main__":
    B, C_in, C_out, H, W = 2, 4, 8, 16, 16

    key = jax.random.PRNGKey(0)
    kx, k1, k2, k3, k4 = jax.random.split(key, 5)
    x = jax.random.normal(kx, (B, C_in, H, W), jnp.float32)
    # Sebastian_ConvBlock2(in_channels=C_in, out_channels=C_out, hidden_channels=C_out)
    w1 = jax.random.normal(k1, (C_out, C_in, KH, KW), jnp.float32) * 0.1
    b1 = jax.random.normal(k2, (C_out,), jnp.float32) * 0.1
    w2 = jax.random.normal(k3, (C_out, C_out, KH, KW), jnp.float32) * 0.1
    b2 = jax.random.normal(k4, (C_out,), jnp.float32) * 0.1
    params = (w1, b1, w2, b2)

    out = jax.jit(sebastian_down2)(x, params)
    out = jax.block_until_ready(out)

    ref = jax.block_until_ready(_reference(x, params))
    assert out.shape == ref.shape, (out.shape, ref.shape)
    np.testing.assert_allclose(np.asarray(out), np.asarray(ref), rtol=1e-3, atol=1e-3)
    print("KERNEL_OK")
</pallas_src>

<mosaic_0001>
module attributes {stable_mosaic.version = 11 : i64} {
  func.func @_fused_kernel(%arg0: i32, %arg1: memref<1x16x64xf32, #tpu.memory_space<vmem>>, %arg2: memref<3x52x32xf32, #tpu.memory_space<vmem>>, %arg3: memref<1x32xf32, #tpu.memory_space<vmem>>, %arg4: memref<3x32x32xf32, #tpu.memory_space<vmem>>, %arg5: memref<1x32xf32, #tpu.memory_space<vmem>>, %arg6: memref<1x16x32xf32, #tpu.memory_space<vmem>>) attributes {dimension_semantics = [#tpu.dimension_semantics<parallel>], iteration_bounds = array<i64: 2>, scalar_prefetch = 0 : i64, scratch_operands = 0 : i64, tpu.core_type = #tpu.core_type<tc>, window_params = [{transform_indices = @transform_0, window_bounds = array<i64: 1, 16, 64>}, {pipeline_mode = #tpu.pipeline_mode<synchronous>, transform_indices = @transform_1, window_bounds = array<i64: 3, 52, 32>}, {pipeline_mode = #tpu.pipeline_mode<synchronous>, transform_indices = @transform_2, window_bounds = array<i64: 1, 32>}, {pipeline_mode = #tpu.pipeline_mode<synchronous>, transform_indices = @transform_3, window_bounds = array<i64: 3, 32, 32>}, {pipeline_mode = #tpu.pipeline_mode<synchronous>, transform_indices = @transform_4, window_bounds = array<i64: 1, 32>}, {transform_indices = @transform_5, window_bounds = array<i64: 1, 16, 32>}]} {
    %c0 = arith.constant 0 : index
    %c0_0 = arith.constant 0 : index
    %c0_1 = arith.constant 0 : index
    %0 = vector.load %arg1[%c0, %c0_0, %c0_1] : memref<1x16x64xf32, #tpu.memory_space<vmem>>, vector<1x16x64xf32>
    %1 = vector.shape_cast %0 : vector<1x16x64xf32> to vector<16x64xf32>
    %2 = vector.extract_strided_slice %1 {offsets = [0, 0], sizes = [16, 52], strides = [1, 1]} : vector<16x64xf32> to vector<16x52xf32>
    %3 = vector.extract_strided_slice %1 {offsets = [0, 4], sizes = [16, 52], strides = [1, 1]} : vector<16x64xf32> to vector<16x52xf32>
    %4 = arith.maximumf %2, %3 : vector<16x52xf32>
    %5 = vector.extract_strided_slice %1 {offsets = [0, 8], sizes = [16, 52], strides = [1, 1]} : vector<16x64xf32> to vector<16x52xf32>
    %6 = arith.maximumf %4, %5 : vector<16x52xf32>
    %7 = vector.extract_strided_slice %1 {offsets = [0, 12], sizes = [16, 52], strides = [1, 1]} : vector<16x64xf32> to vector<16x52xf32>
    %8 = arith.maximumf %6, %7 : vector<16x52xf32>
    %cst = arith.constant 0.000000e+00 : f32
    %9 = vector.broadcast %cst : f32 to vector<1x52xf32>
    %10 = tpu.concatenate %9, %8, %9 in 0 : vector<1x52xf32>, vector<16x52xf32>, vector<1x52xf32> -> vector<18x52xf32>
    %c0_2 = arith.constant 0 : index
    %c0_3 = arith.constant 0 : index
    %11 = vector.load %arg3[%c0_2, %c0_3] : memref<1x32xf32, #tpu.memory_space<vmem>>, vector<1x32xf32>
    %12 = vector.extract_strided_slice %10 {offsets = [0, 0], sizes = [16, 52], strides = [1, 1]} : vector<18x52xf32> to vector<16x52xf32>
    %c0_4 = arith.constant 0 : index
    %c0_5 = arith.constant 0 : index
    %c0_6 = arith.constant 0 : index
    %13 = vector.load %arg2[%c0_4, %c0_5, %c0_6] : memref<3x52x32xf32, #tpu.memory_space<vmem>>, vector<1x52x32xf32>
    %14 = vector.shape_cast %13 : vector<1x52x32xf32> to vector<52x32xf32>
    %cst_7 = arith.constant dense<0.000000e+00> : vector<16x32xf32>
    %15 = tpu.matmul %12, %14, %cst_7 {dimension_numbers = #tpu.dot_dimension_numbers<[1], [0], [0], [1], [0, 0, 1, 1], [], []>} : vector<16x52xf32>, vector<52x32xf32>, vector<16x32xf32> -> vector<16x32xf32>
    %16 = vector.broadcast %11 : vector<1x32xf32> to vector<16x32xf32>
    %17 = arith.addf %16, %15 : vector<16x32xf32>
    %18 = vector.extract_strided_slice %10 {offsets = [1, 0], sizes = [16, 52], strides = [1, 1]} : vector<18x52xf32> to vector<16x52xf32>
    %c1 = arith.constant 1 : index
    %c0_8 = arith.constant 0 : index
    %c0_9 = arith.constant 0 : index
    %19 = vector.load %arg2[%c1, %c0_8, %c0_9] : memref<3x52x32xf32, #tpu.memory_space<vmem>>, vector<1x52x32xf32>
    %20 = vector.shape_cast %19 : vector<1x52x32xf32> to vector<52x32xf32>
    %cst_10 = arith.constant dense<0.000000e+00> : vector<16x32xf32>
    %21 = tpu.matmul %18, %20, %cst_10 {dimension_numbers = #tpu.dot_dimension_numbers<[1], [0], [0], [1], [0, 0, 1, 1], [], []>} : vector<16x52xf32>, vector<52x32xf32>, vector<16x32xf32> -> vector<16x32xf32>
    %22 = arith.addf %17, %21 : vector<16x32xf32>
    %23 = vector.extract_strided_slice %10 {offsets = [2, 0], sizes = [16, 52], strides = [1, 1]} : vector<18x52xf32> to vector<16x52xf32>
    %c2 = arith.constant 2 : index
    %c0_11 = arith.constant 0 : index
    %c0_12 = arith.constant 0 : index
    %24 = vector.load %arg2[%c2, %c0_11, %c0_12] : memref<3x52x32xf32, #tpu.memory_space<vmem>>, vector<1x52x32xf32>
    %25 = vector.shape_cast %24 : vector<1x52x32xf32> to vector<52x32xf32>
    %cst_13 = arith.constant dense<0.000000e+00> : vector<16x32xf32>
    %26 = tpu.matmul %23, %25, %cst_13 {dimension_numbers = #tpu.dot_dimension_numbers<[1], [0], [0], [1], [0, 0, 1, 1], [], []>} : vector<16x52xf32>, vector<52x32xf32>, vector<16x32xf32> -> vector<16x32xf32>
    %27 = arith.addf %22, %26 : vector<16x32xf32>
    %cst_14 = arith.constant 0.000000e+00 : f32
    %28 = vector.broadcast %cst_14 : f32 to vector<16x32xf32>
    %29 = arith.subf %28, %27 : vector<16x32xf32>
    %30 = math.exp %29 : vector<16x32xf32>
    %cst_15 = arith.constant 1.000000e+00 : f32
    %31 = vector.broadcast %cst_15 : f32 to vector<16x32xf32>
    %32 = arith.addf %31, %30 : vector<16x32xf32>
    %33 = tpu.reciprocal %32 : vector<16x32xf32> -> vector<16x32xf32>
    %34 = arith.mulf %27, %33 : vector<16x32xf32>
    %cst_16 = arith.constant 0.000000e+00 : f32
    %35 = vector.broadcast %cst_16 : f32 to vector<1x32xf32>
    %36 = tpu.concatenate %35, %34, %35 in 0 : vector<1x32xf32>, vector<16x32xf32>, vector<1x32xf32> -> vector<18x32xf32>
    %c0_17 = arith.constant 0 : index
    %c0_18 = arith.constant 0 : index
    %37 = vector.load %arg5[%c0_17, %c0_18] : memref<1x32xf32, #tpu.memory_space<vmem>>, vector<1x32xf32>
    %38 = vector.extract_strided_slice %36 {offsets = [0, 0], sizes = [16, 32], strides = [1, 1]} : vector<18x32xf32> to vector<16x32xf32>
    %c0_19 = arith.constant 0 : index
    %c0_20 = arith.constant 0 : index
    %c0_21 = arith.constant 0 : index
    %39 = vector.load %arg4[%c0_19, %c0_20, %c0_21] : memref<3x32x32xf32, #tpu.memory_space<vmem>>, vector<1x32x32xf32>
    %40 = vector.shape_cast %39 : vector<1x32x32xf32> to vector<32x32xf32>
    %cst_22 = arith.constant dense<0.000000e+00> : vector<16x32xf32>
    %41 = tpu.matmul %38, %40, %cst_22 {dimension_numbers = #tpu.dot_dimension_numbers<[1], [0], [0], [1], [0, 0, 1, 1], [], []>} : vector<16x32xf32>, vector<32x32xf32>, vector<16x32xf32> -> vector<16x32xf32>
    %42 = vector.broadcast %37 : vector<1x32xf32> to vector<16x32xf32>
    %43 = arith.addf %42, %41 : vector<16x32xf32>
    %44 = vector.extract_strided_slice %36 {offsets = [1, 0], sizes = [16, 32], strides = [1, 1]} : vector<18x32xf32> to vector<16x32xf32>
    %c1_23 = arith.constant 1 : index
    %c0_24 = arith.constant 0 : index
    %c0_25 = arith.constant 0 : index
    %45 = vector.load %arg4[%c1_23, %c0_24, %c0_25] : memref<3x32x32xf32, #tpu.memory_space<vmem>>, vector<1x32x32xf32>
    %46 = vector.shape_cast %45 : vector<1x32x32xf32> to vector<32x32xf32>
    %cst_26 = arith.constant dense<0.000000e+00> : vector<16x32xf32>
    %47 = tpu.matmul %44, %46, %cst_26 {dimension_numbers = #tpu.dot_dimension_numbers<[1], [0], [0], [1], [0, 0, 1, 1], [], []>} : vector<16x32xf32>, vector<32x32xf32>, vector<16x32xf32> -> vector<16x32xf32>
    %48 = arith.addf %43, %47 : vector<16x32xf32>
    %49 = vector.extract_strided_slice %36 {offsets = [2, 0], sizes = [16, 32], strides = [1, 1]} : vector<18x32xf32> to vector<16x32xf32>
    %c2_27 = arith.constant 2 : index
    %c0_28 = arith.constant 0 : index
    %c0_29 = arith.constant 0 : index
    %50 = vector.load %arg4[%c2_27, %c0_28, %c0_29] : memref<3x32x32xf32, #tpu.memory_space<vmem>>, vector<1x32x32xf32>
    %51 = vector.shape_cast %50 : vector<1x32x32xf32> to vector<32x32xf32>
    %cst_30 = arith.constant dense<0.000000e+00> : vector<16x32xf32>
    %52 = tpu.matmul %49, %51, %cst_30 {dimension_numbers = #tpu.dot_dimension_numbers<[1], [0], [0], [1], [0, 0, 1, 1], [], []>} : vector<16x32xf32>, vector<32x32xf32>, vector<16x32xf32> -> vector<16x32xf32>
    %53 = arith.addf %48, %52 : vector<16x32xf32>
    %cst_31 = arith.constant 0.000000e+00 : f32
    %54 = vector.broadcast %cst_31 : f32 to vector<16x32xf32>
    %55 = arith.subf %54, %53 : vector<16x32xf32>
    %56 = math.exp %55 : vector<16x32xf32>
    %cst_32 = arith.constant 1.000000e+00 : f32
    %57 = vector.broadcast %cst_32 : f32 to vector<16x32xf32>
    %58 = arith.addf %57, %56 : vector<16x32xf32>
    %59 = tpu.reciprocal %58 : vector<16x32xf32> -> vector<16x32xf32>
    %60 = arith.mulf %53, %59 : vector<16x32xf32>
    %c0_33 = arith.constant 0 : index
    %c0_34 = arith.constant 0 : index
    %c0_35 = arith.constant 0 : index
    %61 = vector.load %arg6[%c0_33, %c0_34, %c0_35] : memref<1x16x32xf32, #tpu.memory_space<vmem>>, vector<1x16x32xf32>
    %62 = vector.shape_cast %61 : vector<1x16x32xf32> to vector<16x32xf32>
    %63 = vector.shape_cast %60 : vector<16x32xf32> to vector<1x16x32xf32>
    tpu.vector_store %arg6[%c0_33, %c0_34, %c0_35], %63 {strides = array<i32>} : memref<1x16x32xf32, #tpu.memory_space<vmem>>, vector<1x16x32xf32>,
    return
  }
  func.func @transform_0(%arg0: i32) -> (i32, i32, i32) {
    %c0_i32 = arith.constant 0 : i32
    %c0_i32_0 = arith.constant 0 : i32
    %c0_i32_1 = arith.constant 0 : i32
    return %arg0, %c0_i32, %c0_i32_0 : i32, i32, i32
  }
  func.func @transform_1(%arg0: i32) -> (i32, i32, i32) {
    %c0_i32 = arith.constant 0 : i32
    %c0_i32_0 = arith.constant 0 : i32
    %c0_i32_1 = arith.constant 0 : i32
    %c0_i32_2 = arith.constant 0 : i32
    return %c0_i32, %c0_i32_0, %c0_i32_1 : i32, i32, i32
  }
  func.func @transform_2(%arg0: i32) -> (i32, i32) {
    %c0_i32 = arith.constant 0 : i32
    %c0_i32_0 = arith.constant 0 : i32
    %c0_i32_1 = arith.constant 0 : i32
    return %c0_i32, %c0_i32_0 : i32, i32
  }
  func.func @transform_3(%arg0: i32) -> (i32, i32, i32) {
    %c0_i32 = arith.constant 0 : i32
    %c0_i32_0 = arith.constant 0 : i32
    %c0_i32_1 = arith.constant 0 : i32
    %c0_i32_2 = arith.constant 0 : i32
    return %c0_i32, %c0_i32_0, %c0_i32_1 : i32, i32, i32
  }
  func.func @transform_4(%arg0: i32) -> (i32, i32) {
    %c0_i32 = arith.constant 0 : i32
    %c0_i32_0 = arith.constant 0 : i32
    %c0_i32_1 = arith.constant 0 : i32
    return %c0_i32, %c0_i32_0 : i32, i32
  }
  func.func @transform_5(%arg0: i32) -> (i32, i32, i32) {
    %c0_i32 = arith.constant 0 : i32
    %c0_i32_0 = arith.constant 0 : i32
    %c0_i32_1 = arith.constant 0 : i32
    return %arg0, %c0_i32, %c0_i32_0 : i32, i32, i32
  }
}

</mosaic_0001>

<llo_original>
// kernel: tile.13
$region0: #{tile.13}
  #allocation0 [shape = 's32[1]{0}', space=sflag, size = 0x4, scoped, tag = 'scoped memory for tile.13']
  %s0 = inlined_call_operand.vmem [shape: f32[8], index: 0, kind: input, shape index: {}]
  %s1 = inlined_call_operand.vmem [shape: f32[4,8], index: 1, kind: output, shape index: {}]
  // Predicated region
  $region2: #{tile.13} parent=0 // pred_check
    _
  $region3: #{tile.13} parent=0 // pred_check_branch
    %3 = sbr.rel (0) target = $region5
  $region4: #{tile.13} parent=0 // pred_region
    _
  $region5: #{tile.13} parent=0 // pred_fallthru
    _
  %v4 = vld [vmem:[%s0] ss:$0 sm:$0xff]
  %5 = vst [vmem:[%s1] sm:$0xf] %v4

// kernel: tile.14
$region0: #{tile.14}
  %s0 = inlined_call_operand.vmem [shape: f32[4,8], index: 0, kind: input, shape index: {}]
  %s1 = inlined_call_operand.vmem [shape: f32[1,32], index: 1, kind: output, shape index: {}]
  $region1: #{tile.14} parent=0
    #allocation0 [shape = 'u8[4096]{0}', space=vmem, size = 0x1000, scoped, tag = 'scoped mem for output reshape']
    #allocation1 [shape = 'u8[4096]{0}', space=vmem, size = 0x1000, scoped, tag = 'scoped mem for input reshape']
    %s3 = sshllo.u32 0, 4
    %v4 = vld [vmem:[%s0] sm:%s3]
    %5 = vst [vmem:[#allocation1] sm:%s3] %v4
    %v6 = vld [vmem:[#allocation1] sm:$0x1]
    %vm7 = vcmask 64512
    %8 = vst.msk [vmem:[#allocation0] sm:$0x1] %vm7, %v6
    %s9 = scalar_lea.vmem [#allocation1], 3
    %v10 = vld [vmem:[%s9] sm:$0x1]
    %11 = vrot.lane.b32.xlu0 %v10, 24
    %v12 = vpop.permute.xlu0 %11
    %vm13 = vcmask 261312
    %14 = vst.msk [vmem:[#allocation0] sm:$0x1] %vm13, %v12
    %s15 = scalar_lea.vmem [#allocation1], 2
    %v16 = vld [vmem:[%s15] sm:$0x1]
    %17 = vrot.lane.b32.xlu0 %v16, 16
    %v18 = vpop.permute.xlu0 %17
    %vm19 = vcmask 195712
    %20 = vst.msk [vmem:[#allocation0] sm:$0x1] %vm19, %v18
    %s21 = scalar_lea.vmem [#allocation1], 1
    %v22 = vld [vmem:[%s21] sm:$0x1]
    %23 = vrot.lane.b32.xlu0 %v22, 8
    %v24 = vpop.permute.xlu0 %23
    %vm25 = vcmask 130112
    %26 = vst.msk [vmem:[#allocation0] sm:$0x1] %vm25, %v24
    %s28 = sshllo.u32 0, 1
    %v30 = vld [vmem:[#allocation0] sm:%s28]
    %s31 = sshllo.u32 0, 1
    %32 = vst [vmem:[%s1] sm:%s31] %v30

// kernel: sebastian_down2.1
$region0: #{sebastian_down2.1}
  #allocation0 [shape = 'u32[]', space=smem, size = 0x4, offset = 0x4, fixed_abs, tag = 'smem constant byte address 0x4 - core index']
  #allocation1 [shape = 'u32[144,128]{1,0:T(1,128)}', space=vmem, size = 0x12000, scoped, tag = 'internal scratch']
  %s0 = inlined_call_operand.vmem [shape: f32[2,16,64], index: 0, kind: input, shape index: {}]
  %s1 = inlined_call_operand.vmem [shape: f32[3,52,32], index: 1, kind: input, shape index: {}]
  %s2 = inlined_call_operand.vmem [shape: f32[1,32], index: 2, kind: input, shape index: {}]
  %s3 = inlined_call_operand.vmem [shape: f32[3,32,32], index: 3, kind: input, shape index: {}]
  %s4 = inlined_call_operand.vmem [shape: f32[1,32], index: 4, kind: input, shape index: {}]
  %s5 = inlined_call_operand.vmem [shape: f32[2,16,32], index: 5, kind: output, shape index: {}]
  %s6 = sld [smem:[#allocation0]]
  $region53: #{sebastian_down2.1} parent=0
    _
  %s8 = ssub.s32 1, %s6
  %s9 = scalar_select 0, %s8, %s6
  loop: start=0, step=1, limit=4
  $region2: #{sebastian_down2.1} parent=0 // loop_pre_header
    _
  $region3: #{sebastian_down2.1} parent=0 // loop_header
    %s11 = sphi 0, %s15
    %p12 = scmp.ge.s32.totalorder %s11, 4
    %s21 = sphi 0, %s23
    %s24 = sphi 0, %s21
    %s25 = sphi 0, %s24
    %s41 = sphi 0, %s25
    %s45 = sphi 0, %s45
    %s47 = sphi 0, %s45
    %s48 = sphi 0, %s47
    %s62 = sphi 0, %s48
    %s66 = sphi 0, %s66
    %s68 = sphi 0, %s66
    %s69 = sphi 0, %s68
    %s83 = sphi 0, %s69
    %s87 = sphi 0, %s87
    %s89 = sphi 0, %s87
    %s90 = sphi 0, %s89
    %s104 = sphi 0, %s90
    %s108 = sphi 0, %s108
    %s110 = sphi 0, %s108
    %s111 = sphi 0, %s110
    %s125 = sphi 0, %s111
    %s131 = sphi 0, %s133
    %s134 = sphi 0, %s131
    %s135 = sphi 0, %s134
    %s151 = sphi 0, %s135
  $region4: #{sebastian_down2.1} parent=0 // loop_header_branch
    %14 = sbr.rel (%p12) target = $region8
  $region5: #{sebastian_down2.1} parent=0 // loop_body
    %s16 = ssub.s32 %s11, 1
    %s17 = ssub.s32 %s11, 2
    %s18 = sadd.s32 %s11, 1
    %s19 = ssub.s32 %s11, %s18
    %p20 = scmp.eq.s32.totalorder %s19, 0
    %s22 = sadd.s32 %s21, 1
    %s23 = scalar_select %p20, %s21, %s22
    %p26 = pneg %p20
    %p27 = scmp.eq.s32.totalorder %s11, 1
    %p28 = por %p26, %p27
    %p29 = scmp.ne.s32.totalorder %s21, %s24
    %p30 = scmp.eq.s32.totalorder %s11, 0
    %p31 = por %p29, %p30
    %p32 = scmp.ne.s32.totalorder %s21, %s24
    %p33 = scmp.eq.s32.totalorder %s16, 1
    %p34 = por %p32, %p33
    %p35 = scmp.ne.s32.totalorder %s24, %s25
    %p36 = scmp.eq.s32.totalorder %s16, 0
    %p37 = por %p35, %p36
    %p38 = scmp.ne.s32.totalorder %s24, %s25
    %p39 = scmp.eq.s32.totalorder %s17, 1
    %p40 = por %p38, %p39
    %p42 = scmp.ne.s32.totalorder %s25, %s41
    %p43 = scmp.eq.s32.totalorder %s17, 0
    %p44 = por %p42, %p43
    %s46 = sadd.s32 %s45, 1
    %p49 = scmp.eq.s32.totalorder %s11, 1
    %p50 = scmp.ne.s32.totalorder %s45, %s47
    %p51 = scmp.eq.s32.totalorder %s11, 0
    %p52 = por %p50, %p51
    %p53 = scmp.ne.s32.totalorder %s45, %s47
    %p54 = scmp.eq.s32.totalorder %s16, 1
    %p55 = por %p53, %p54
    %p56 = scmp.ne.s32.totalorder %s47, %s48
    %p57 = scmp.eq.s32.totalorder %s16, 0
    %p58 = por %p56, %p57
    %p59 = scmp.ne.s32.totalorder %s47, %s48
    %p60 = scmp.eq.s32.totalorder %s17, 1
    %p61 = por %p59, %p60
    %p63 = scmp.ne.s32.totalorder %s48, %s62
    %p64 = scmp.eq.s32.totalorder %s17, 0
    %p65 = por %p63, %p64
    %s67 = sadd.s32 %s66, 1
    %p70 = scmp.eq.s32.totalorder %s11, 1
    %p71 = scmp.ne.s32.totalorder %s66, %s68
    %p72 = scmp.eq.s32.totalorder %s11, 0
    %p73 = por %p71, %p72
    %p74 = scmp.ne.s32.totalorder %s66, %s68
    %p75 = scmp.eq.s32.totalorder %s16, 1
    %p76 = por %p74, %p75
    %p77 = scmp.ne.s32.totalorder %s68, %s69
    %p78 = scmp.eq.s32.totalorder %s16, 0
    %p79 = por %p77, %p78
    %p80 = scmp.ne.s32.totalorder %s68, %s69
    %p81 = scmp.eq.s32.totalorder %s17, 1
    %p82 = por %p80, %p81
    %p84 = scmp.ne.s32.totalorder %s69, %s83
    %p85 = scmp.eq.s32.totalorder %s17, 0
    %p86 = por %p84, %p85
    %s88 = sadd.s32 %s87, 1
    %p91 = scmp.eq.s32.totalorder %s11, 1
    %p92 = scmp.ne.s32.totalorder %s87, %s89
    %p93 = scmp.eq.s32.totalorder %s11, 0
    %p94 = por %p92, %p93
    %p95 = scmp.ne.s32.totalorder %s87, %s89
    %p96 = scmp.eq.s32.totalorder %s16, 1
    %p97 = por %p95, %p96
    %p98 = scmp.ne.s32.totalorder %s89, %s90
    %p99 = scmp.eq.s32.totalorder %s16, 0
    %p100 = por %p98, %p99
    %p101 = scmp.ne.s32.totalorder %s89, %s90
    %p102 = scmp.eq.s32.totalorder %s17, 1
    %p103 = por %p101, %p102
    %p105 = scmp.ne.s32.totalorder %s90, %s104
    %p106 = scmp.eq.s32.totalorder %s17, 0
    %p107 = por %p105, %p106
    %s109 = sadd.s32 %s108, 1
    %p112 = scmp.eq.s32.totalorder %s11, 1
    %p113 = scmp.ne.s32.totalorder %s108, %s110
    %p114 = scmp.eq.s32.totalorder %s11, 0
    %p115 = por %p113, %p114
    %p116 = scmp.ne.s32.totalorder %s108, %s110
    %p117 = scmp.eq.s32.totalorder %s16, 1
    %p118 = por %p116, %p117
    %p119 = scmp.ne.s32.totalorder %s110, %s111
    %p120 = scmp.eq.s32.totalorder %s16, 0
    %p121 = por %p119, %p120
    %p122 = scmp.ne.s32.totalorder %s110, %s111
    %p123 = scmp.eq.s32.totalorder %s17, 1
    %p124 = por %p122, %p123
    %p126 = scmp.ne.s32.totalorder %s111, %s125
    %p127 = scmp.eq.s32.totalorder %s17, 0
    %p128 = por %p126, %p127
    %s129 = ssub.s32 %s11, %s18
    %p130 = scmp.eq.s32.totalorder %s129, 0
    %s132 = sadd.s32 %s131, 1
    %s133 = scalar_select %p130, %s131, %s132
    %p136 = pneg %p130
    %p137 = scmp.eq.s32.totalorder %s11, 1
    %p138 = por %p136, %p137
    %p139 = scmp.ne.s32.totalorder %s131, %s134
    %p140 = scmp.eq.s32.totalorder %s11, 0
    %p141 = por %p139, %p140
    %p142 = scmp.ne.s32.totalorder %s131, %s134
    %p143 = scmp.eq.s32.totalorder %s16, 1
    %p144 = por %p142, %p143
    %p145 = scmp.ne.s32.totalorder %s134, %s135
    %p146 = scmp.eq.s32.totalorder %s16, 0
    %p147 = por %p145, %p146
    %p148 = scmp.ne.s32.totalorder %s134, %s135
    %p149 = scmp.eq.s32.totalorder %s17, 1
    %p150 = por %p148, %p149
    %p152 = scmp.ne.s32.totalorder %s135, %s151
    %p153 = scmp.eq.s32.totalorder %s17, 0
    %p154 = por %p152, %p153
    %p155 = scmp.le.s32.totalorder 1, %s11
    %p156 = scmp.lt.s32.totalorder %s11, 3
    %p157 = pnand %p155, %p156
    %p158 = pneg %p157
    // Predicated region
    $region9: #{sebastian_down2.1} parent=5 // pred_check
      _
    $region10: #{sebastian_down2.1} parent=5 // pred_check_branch
      %160 = sbr.rel (%p157) target = $region12
    $region11: #{sebastian_down2.1} parent=5 // pred_region
      %s161 = ssub.s32 %s11, 1
      // Predicated region
      $region13: #{sebastian_down2.1} parent=11 // pred_check
        %p162 = pneg %p58
      $region14: #{sebastian_down2.1} parent=11 // pred_check_branch
        %164 = sbr.rel (%p162) target = $region16
      $region15: #{sebastian_down2.1} parent=11 // pred_region
        _
      $region16: #{sebastian_down2.1} parent=11 // pred_fallthru
        _
      // Predicated region
      $region17: #{sebastian_down2.1} parent=11 // pred_check
        %p165 = pneg %p79
      $region18: #{sebastian_down2.1} parent=11 // pred_check_branch
        %167 = sbr.rel (%p165) target = $region20
      $region19: #{sebastian_down2.1} parent=11 // pred_region
        _
      $region20: #{sebastian_down2.1} parent=11 // pred_fallthru
        _
      // Predicated region
      $region21: #{sebastian_down2.1} parent=11 // pred_check
        %p168 = pneg %p100
      $region22: #{sebastian_down2.1} parent=11 // pred_check_branch
        %170 = sbr.rel (%p168) target = $region24
      $region23: #{sebastian_down2.1} parent=11 // pred_region
        _
      $region24: #{sebastian_down2.1} parent=11 // pred_fallthru
        _
      // Predicated region
      $region25: #{sebastian_down2.1} parent=11 // pred_check
        %p171 = pneg %p121
      $region26: #{sebastian_down2.1} parent=11 // pred_check_branch
        %173 = sbr.rel (%p171) target = $region28
      $region27: #{sebastian_down2.1} parent=11 // pred_region
        _
      $region28: #{sebastian_down2.1} parent=11 // pred_fallthru
        _
    $region12: #{sebastian_down2.1} parent=5 // pred_fallthru
      _
    %p174 = scmp.lt.s32.totalorder %s11, 2
    // Predicated region
    $region29: #{sebastian_down2.1} parent=5 // pred_check
      %p175 = pneg %p174
    $region30: #{sebastian_down2.1} parent=5 // pred_check_branch
      %177 = sbr.rel (%p175) target = $region32
    $region31: #{sebastian_down2.1} parent=5 // pred_region
      // Predicated region
      $region33: #{sebastian_down2.1} parent=31 // pred_check
        %p178 = pneg %p31
      $region34: #{sebastian_down2.1} parent=31 // pred_check_branch
        %180 = sbr.rel (%p178) target = $region36
      $region35: #{sebastian_down2.1} parent=31 // pred_region
        %p181 = scmp.lt.s32.totalorder %s11, 1
        %s182 = scalar_select %p181, %s11, 1
        %s183 = smul.addr %s182, 2
        %s184 = smul.addr %s183, 8
        %s185 = scalar_lea.vmem %s0, %s184
      $region36: #{sebastian_down2.1} parent=31 // pred_fallthru
        _
    $region32: #{sebastian_down2.1} parent=5 // pred_fallthru
      _
    %p186 = scmp.le.s32.totalorder 1, %s11
    %p187 = scmp.lt.s32.totalorder %s11, 3
    %p188 = pnand %p186, %p187
    %p189 = pneg %p188
    // Predicated region
    $region37: #{sebastian_down2.1} parent=5 // pred_check
      _
    $region38: #{sebastian_down2.1} parent=5 // pred_check_branch
      %191 = sbr.rel (%p188) target = $region40
    $region39: #{sebastian_down2.1} parent=5 // pred_region
      %s192 = ssub.s32 %s11, 1
      %p193 = scmp.lt.s32.totalorder %s16, 1
      %s194 = scalar_select %p193, %s16, 1
      %s195 = smul.addr %s194, 2
      %s196 = smul.addr %s195, 8
      %s197 = scalar_lea.vmem %s0, %s196
      %p198 = pneg %p37
      %p199 = pneg %p34
      %p200 = pneg %p58
      %p201 = pneg %p55
      %p202 = pneg %p79
      %p203 = pneg %p76
      %p204 = pneg %p100
      %p205 = pneg %p97
      %p206 = pneg %p121
      %p207 = pneg %p118
      %p208 = pneg %p147
      %p209 = pneg %p144
      %p210 = scmp.lt.s32.totalorder %s16, 1
      %s211 = scalar_select %p210, %s16, 1
      %s212 = smul.addr %s211, 2
      %s213 = smul.addr %s212, 8
      %s214 = scalar_lea.vmem %s5, %s213
      %p215 = scmp.lt.s32.totalorder %s16, 1
      %s216 = scalar_select %p215, %s16, 1
      %s217 = smul.addr %s216, 2
      %s218 = smul.addr %s217, 8
      %s219 = scalar_lea.vmem %s0, %s218
      %p220 = scmp.lt.s32.totalorder %s16, 1
      %s221 = scalar_select %p220, %s16, 1
      %s222 = smul.addr %s221, 2
      %s223 = smul.addr %s222, 8
      %s224 = scalar_lea.vmem %s5, %s223
      %v225 = vld [vmem:[%s219] sm:$0xff]
      %v226 = vld [vmem:[%s219 + $0x8] sm:$0xff]
      %229 = vrot.lane.b32.xlu0 %v225, 124
      %v230 = vpop.permute.xlu0 %229
      %231 = vrot.lane.b32.xlu0 %v226, 124
      %v232 = vpop.permute.xlu0 %231
      %v235 = vmax.f32 %v225, %v230
      %v236 = vmax.f32 %v226, %v232
      %237 = vrot.lane.b32.xlu0 %v225, 120
      %v238 = vpop.permute.xlu0 %237
      %239 = vrot.lane.b32.xlu0 %v226, 120
      %v240 = vpop.permute.xlu0 %239
      %v243 = vmax.f32 %v235, %v238
      %v244 = vmax.f32 %v236, %v240
      %245 = vrot.lane.b32.xlu0 %v225, 116
      %v246 = vpop.permute.xlu0 %245
      %247 = vrot.lane.b32.xlu0 %v226, 116
      %v248 = vpop.permute.xlu0 %247
      %v251 = vmax.f32 %v243, %v246
      %v252 = vmax.f32 %v244, %v248
      %vm255 = vcmask 1040384
      %v256 = vrot.slane %v251, 7
      %v257 = vrot.slane %v252, 7
      %v258 = vsel %vm255, %v256, %v257
      %v261 = vsel %vm255, 0.0, %v256
      %v262 = vsel %vm255, %v257, 0.0
      %v263 = vld [vmem:[%s2] sm:$0x1]
      %v264 = vld [vmem:[%s1] sm:$0xff]
      %v265 = vld [vmem:[%s1 + $0x8] sm:$0xff]
      %v266 = vld [vmem:[%s1 + $0x10] sm:$0xff]
      %v267 = vld [vmem:[%s1 + $0x18] sm:$0xff]
      %v268 = vld [vmem:[%s1 + $0x20] sm:$0xff]
      %v269 = vld [vmem:[%s1 + $0x28] sm:$0xff]
      %v270 = vld [vmem:[%s1 + $0x30] sm:$0xf]
      %vm271 = vcmask 424960
      %v273 = vsel %vm271, %v261, 0
      %v275 = vsel %vm271, %v258, 0
      %vm277 = vcmask 1043456
      %v279 = vsel %vm277, %v270, 0
      %281 = vmatprep.subr.mxu0 0.0
      %282 = vmatpush1.msra.mxu0 %v264
      %283 = vmatprep.subr.mxu0 0.0
      %284 = vmatpush1.msra.mxu0 %v265
      %285 = vmatprep.subr.mxu0 0.0
      %286 = vmatpush1.msra.mxu0 %v266
      %287 = vmatprep.subr.mxu0 0.0
      %288 = vmatpush1.msra.mxu0 %v267
      %289 = vmatprep.subr.mxu0 0.0
      %290 = vmatpush1.msra.mxu0 %v268
      %291 = vmatprep.subr.mxu0 0.0
      %292 = vmatpush1.msra.mxu0 %v269
      %293 = vmatprep.subr.mxu0 0.0
      %294 = vmatpush1.msra.mxu0 %v279
      %295 = vmatprep.subr.mxu0 0.0
      %296 = vmatpush1.msra.mxu0 0.0
      %297 = vmatprep.subr.mxu0 0.0
      %298 = vmatpush1.msra.mxu0 0.0
      %299 = vmatprep.subr.mxu0 0.0
      %300 = vmatpush1.msra.mxu0 0.0
      %301 = vmatprep.subr.mxu0 0.0
      %302 = vmatpush1.msra.mxu0 0.0
      %303 = vmatprep.subr.mxu0 0.0
      %304 = vmatpush1.msra.mxu0 0.0
      %305 = vmatprep.subr.mxu0 0.0
      %306 = vmatpush1.msra.mxu0 0.0
      %307 = vmatprep.subr.mxu0 0.0
      %308 = vmatpush1.msra.mxu0 0.0
      %309 = vmatprep.subr.mxu0 0.0
      %310 = vmatpush1.msra.mxu0 0.0
      %311 = vmatprep.subr.mxu0 0.0
      %312 = vmatpush1.msra.mxu0 0.0
      %313 = vmatprep.subr.mxu0 0.0
      %314 = vmatpush1.msra.mxu0 0.0
      %315 = vmatprep.subr.mxu0 0.0
      %316 = vmatpush1.msra.mxu0 0.0
      %317 = vmatprep.subr.mxu0 0.0
      %318 = vmatpush1.msra.mxu0 0.0
      %319 = vmatprep.subr.mxu0 0.0
      %320 = vmatpush1.msra.mxu0 0.0
      %321 = vmatprep.subr.mxu0 0.0
      %322 = vmatpush1.msra.mxu0 0.0
      %323 = vmatprep.subr.mxu0 0.0
      %324 = vmatpush1.msra.mxu0 0.0
      %325 = vmatprep.subr.mxu0 0.0
      %326 = vmatpush1.msra.mxu0 0.0
      %327 = vmatprep.subr.mxu0 0.0
      %328 = vmatpush1.msra.mxu0 0.0
      %329 = vmatprep.subr.mxu0 0.0
      %330 = vmatpush1.msra.mxu0 0.0
      %331 = vmatprep.subr.mxu0 0.0
      %332 = vmatpush1.msra.mxu0 0.0
      %333 = vmatprep.subr.mxu0 0.0
      %334 = vmatpush1.msra.mxu0 0.0
      %335 = vmatprep.subr.mxu0 0.0
      %336 = vmatpush1.msra.mxu0 0.0
      %337 = vmatprep.subr.mxu0 0.0
      %338 = vmatpush1.msra.mxu0 0.0
      %339 = vmatprep.subr.mxu0 0.0
      %340 = vmatpush1.msra.mxu0 0.0
      %341 = vmatprep.subr.mxu0 0.0
      %342 = vmatpush1.msra.mxu0 0.0
      %343 = vmatprep.subr.mxu0 0.0
      %344 = vmatpush1.msra.mxu0 0.0
      %345 = vmatprep.mubr.f32.mxu0 0.0
      %346 = vmatmul.mubr.f32.gmra.mrb[0].mxu0 %v273
      %v347 = vpop.f32.mrb[0].mxu0
      %v348 = vadd.f32 0.0, %v347
      %v349 = vpop.f32.mrb[0].mxu0
      %350 = vmatprep.mubr.f32.mxu0 0.0
      %351 = vmatmul.mubr.f32.gmra.mrb[0].mxu0 %v275
      %v352 = vpop.f32.mrb[0].mxu0
      %v353 = vadd.f32 0.0, %v352
      %v354 = vpop.f32.mrb[0].mxu0
      %355 = vdwg.mxu0
      %v357 = vlaneseq
      %v358 = vshrl.u32 %v357, 7
      %v359 = vsub.s32 0, %v358
      %v360 = vrot.slane %v263, %v359
      %v362 = vadd.f32 %v360, %v348
      %v363 = vadd.f32 %v360, %v353
      %s364 = scalar_lea.vmem %s1, 56
      %v365 = vld [vmem:[%s364] sm:$0xff]
      %v366 = vld [vmem:[%s364 + $0x8] sm:$0xff]
      %v367 = vld [vmem:[%s364 + $0x10] sm:$0xff]
      %v368 = vld [vmem:[%s364 + $0x18] sm:$0xff]
      %v369 = vld [vmem:[%s364 + $0x20] sm:$0xff]
      %v370 = vld [vmem:[%s364 + $0x28] sm:$0xff]
      %v371 = vld [vmem:[%s364 + $0x30] sm:$0xf]
      %vm373 = vcmask 1046528
      %v374 = vrot.slane %v261, 1
      %v375 = vrot.slane %v258, 1
      %v376 = vsel %vm373, %v374, %v375
      %v377 = vrot.slane %v262, 1
      %v378 = vsel %vm373, %v375, %v377
      %v379 = vsel %vm271, %v376, 0
      %v381 = vsel %vm271, %v378, 0
      %v384 = vsel %vm277, %v371, 0
      %386 = vmatprep.subr.mxu0 0.0
      %387 = vmatpush1.msra.mxu0 %v365
      %388 = vmatprep.subr.mxu0 0.0
      %389 = vmatpush1.msra.mxu0 %v366
      %390 = vmatprep.subr.mxu0 0.0
      %391 = vmatpush1.msra.mxu0 %v367
      %392 = vmatprep.subr.mxu0 0.0
      %393 = vmatpush1.msra.mxu0 %v368
      %394 = vmatprep.subr.mxu0 0.0
      %395 = vmatpush1.msra.mxu0 %v369
      %396 = vmatprep.subr.mxu0 0.0
      %397 = vmatpush1.msra.mxu0 %v370
      %398 = vmatprep.subr.mxu0 0.0
      %399 = vmatpush1.msra.mxu0 %v384
      %400 = vmatprep.subr.mxu0 0.0
      %401 = vmatpush1.msra.mxu0 0.0
      %402 = vmatprep.subr.mxu0 0.0
      %403 = vmatpush1.msra.mxu0 0.0
      %404 = vmatprep.subr.mxu0 0.0
      %405 = vmatpush1.msra.mxu0 0.0
      %406 = vmatprep.subr.mxu0 0.0
      %407 = vmatpush1.msra.mxu0 0.0
      %408 = vmatprep.subr.mxu0 0.0
      %409 = vmatpush1.msra.mxu0 0.0
      %410 = vmatprep.subr.mxu0 0.0
      %411 = vmatpush1.msra.mxu0 0.0
      %412 = vmatprep.subr.mxu0 0.0
      %413 = vmatpush1.msra.mxu0 0.0
      %414 = vmatprep.subr.mxu0 0.0
      %415 = vmatpush1.msra.mxu0 0.0
      %416 = vmatprep.subr.mxu0 0.0
      %417 = vmatpush1.msra.mxu0 0.0
      %418 = vmatprep.subr.mxu0 0.0
      %419 = vmatpush1.msra.mxu0 0.0
      %420 = vmatprep.subr.mxu0 0.0
      %421 = vmatpush1.msra.mxu0 0.0
      %422 = vmatprep.subr.mxu0 0.0
      %423 = vmatpush1.msra.mxu0 0.0
      %424 = vmatprep.subr.mxu0 0.0
      %425 = vmatpush1.msra.mxu0 0.0
      %426 = vmatprep.subr.mxu0 0.0
      %427 = vmatpush1.msra.mxu0 0.0
      %428 = vmatprep.subr.mxu0 0.0
      %429 = vmatpush1.msra.mxu0 0.0
      %430 = vmatprep.subr.mxu0 0.0
      %431 = vmatpush1.msra.mxu0 0.0
      %432 = vmatprep.subr.mxu0 0.0
      %433 = vmatpush1.msra.mxu0 0.0
      %434 = vmatprep.subr.mxu0 0.0
      %435 = vmatpush1.msra.mxu0 0.0
      %436 = vmatprep.subr.mxu0 0.0
      %437 = vmatpush1.msra.mxu0 0.0
      %438 = vmatprep.subr.mxu0 0.0
      %439 = vmatpush1.msra.mxu0 0.0
      %440 = vmatprep.subr.mxu0 0.0
      %441 = vmatpush1.msra.mxu0 0.0
      %442 = vmatprep.subr.mxu0 0.0
      %443 = vmatpush1.msra.mxu0 0.0
      %444 = vmatprep.subr.mxu0 0.0
      %445 = vmatpush1.msra.mxu0 0.0
      %446 = vmatprep.subr.mxu0 0.0
      %447 = vmatpush1.msra.mxu0 0.0
      %448 = vmatprep.subr.mxu0 0.0
      %449 = vmatpush1.msra.mxu0 0.0
      %450 = vmatprep.mubr.f32.mxu0 0.0
      %451 = vmatmul.mubr.f32.gmra.mrb[0].mxu0 %v379
      %v452 = vpop.f32.mrb[0].mxu0
      %v453 = vadd.f32 0.0, %v452
      %v454 = vpop.f32.mrb[0].mxu0
      %455 = vmatprep.mubr.f32.mxu0 0.0
      %456 = vmatmul.mubr.f32.gmra.mrb[0].mxu0 %v381
      %v457 = vpop.f32.mrb[0].mxu0
      %v458 = vadd.f32 0.0, %v457
      %v459 = vpop.f32.mrb[0].mxu0
      %460 = vdwg.mxu0
      %v461 = vadd.f32 %v362, %v453
      %v462 = vadd.f32 %v363, %v458
      %s463 = scalar_lea.vmem %s1, 112
      %v464 = vld [vmem:[%s463] sm:$0xff]
      %v465 = vld [vmem:[%s463 + $0x8] sm:$0xff]
      %v466 = vld [vmem:[%s463 + $0x10] sm:$0xff]
      %v467 = vld [vmem:[%s463 + $0x18] sm:$0xff]
      %v468 = vld [vmem:[%s463 + $0x20] sm:$0xff]
      %v469 = vld [vmem:[%s463 + $0x28] sm:$0xff]
      %v470 = vld [vmem:[%s463 + $0x30] sm:$0xf]
      %vm471 = vcmask 1045504
      %v472 = vrot.slane %v261, 2
      %v473 = vrot.slane %v258, 2
      %v474 = vsel %vm471, %v472, %v473
      %v475 = vrot.slane %v262, 2
      %v476 = vsel %vm471, %v473, %v475
      %v477 = vsel %vm271, %v474, 0
      %v479 = vsel %vm271, %v476, 0
      %v482 = vsel %vm277, %v470, 0
      %484 = vmatprep.subr.mxu0 0.0
      %485 = vmatpush1.msra.mxu0 %v464
      %486 = vmatprep.subr.mxu0 0.0
      %487 = vmatpush1.msra.mxu0 %v465
      %488 = vmatprep.subr.mxu0 0.0
      %489 = vmatpush1.msra.mxu0 %v466
      %490 = vmatprep.subr.mxu0 0.0
      %491 = vmatpush1.msra.mxu0 %v467
      %492 = vmatprep.subr.mxu0 0.0
      %493 = vmatpush1.msra.mxu0 %v468
      %494 = vmatprep.subr.mxu0 0.0
      %495 = vmatpush1.msra.mxu0 %v469
      %496 = vmatprep.subr.mxu0 0.0
      %497 = vmatpush1.msra.mxu0 %v482
      %498 = vmatprep.subr.mxu0 0.0
      %499 = vmatpush1.msra.mxu0 0.0
      %500 = vmatprep.subr.mxu0 0.0
      %501 = vmatpush1.msra.mxu0 0.0
      %502 = vmatprep.subr.mxu0 0.0
      %503 = vmatpush1.msra.mxu0 0.0
      %504 = vmatprep.subr.mxu0 0.0
      %505 = vmatpush1.msra.mxu0 0.0
      %506 = vmatprep.subr.mxu0 0.0
      %507 = vmatpush1.msra.mxu0 0.0
      %508 = vmatprep.subr.mxu0 0.0
      %509 = vmatpush1.msra.mxu0 0.0
      %510 = vmatprep.subr.mxu0 0.0
      %511 = vmatpush1.msra.mxu0 0.0
      %512 = vmatprep.subr.mxu0 0.0
      %513 = vmatpush1.msra.mxu0 0.0
      %514 = vmatprep.subr.mxu0 0.0
      %515 = vmatpush1.msra.mxu0 0.0
      %516 = vmatprep.subr.mxu0 0.0
      %517 = vmatpush1.msra.mxu0 0.0
      %518 = vmatprep.subr.mxu0 0.0
      %519 = vmatpush1.msra.mxu0 0.0
      %520 = vmatprep.subr.mxu0 0.0
      %521 = vmatpush1.msra.mxu0 0.0
      %522 = vmatprep.subr.mxu0 0.0
      %523 = vmatpush1.msra.mxu0 0.0
      %524 = vmatprep.subr.mxu0 0.0
      %525 = vmatpush1.msra.mxu0 0.0
      %526 = vmatprep.subr.mxu0 0.0
      %527 = vmatpush1.msra.mxu0 0.0
      %528 = vmatprep.subr.mxu0 0.0
      %529 = vmatpush1.msra.mxu0 0.0
      %530 = vmatprep.subr.mxu0 0.0
      %531 = vmatpush1.msra.mxu0 0.0
      %532 = vmatprep.subr.mxu0 0.0
      %533 = vmatpush1.msra.mxu0 0.0
      %534 = vmatprep.subr.mxu0 0.0
      %535 = vmatpush1.msra.mxu0 0.0
      %536 = vmatprep.subr.mxu0 0.0
      %537 = vmatpush1.msra.mxu0 0.0
      %538 = vmatprep.subr.mxu0 0.0
      %539 = vmatpush1.msra.mxu0 0.0
      %540 = vmatprep.subr.mxu0 0.0
      %541 = vmatpush1.msra.mxu0 0.0
      %542 = vmatprep.subr.mxu0 0.0
      %543 = vmatpush1.msra.mxu0 0.0
      %544 = vmatprep.subr.mxu0 0.0
      %545 = vmatpush1.msra.mxu0 0.0
      %546 = vmatprep.subr.mxu0 0.0
      %547 = vmatpush1.msra.mxu0 0.0
      %548 = vmatprep.mubr.f32.mxu0 0.0
      %549 = vmatmul.mubr.f32.gmra.mrb[0].mxu0 %v477
      %v550 = vpop.f32.mrb[0].mxu0
      %v551 = vadd.f32 0.0, %v550
      %v552 = vpop.f32.mrb[0].mxu0
      %553 = vmatprep.mubr.f32.mxu0 0.0
      %554 = vmatmul.mubr.f32.gmra.mrb[0].mxu0 %v479
      %v555 = vpop.f32.mrb[0].mxu0
      %v556 = vadd.f32 0.0, %v555
      %v557 = vpop.f32.mrb[0].mxu0
      %558 = vdwg.mxu0
      %v559 = vadd.f32 %v461, %v551
      %v560 = vadd.f32 %v462, %v556
      %v561 = vsub.f32 0.0, %v559
      %v562 = vsub.f32 0.0, %v560
      %v563 = vmul.f32 %v561, 1.442695
      %v564 = vpow.pop %v563
      %v565 = vmul.f32 %v562, 1.442695
      %v566 = vpow.pop %v565
      %v567 = vadd.f32 %v564, 1.0
      %v568 = vadd.f32 %v566, 1.0
      %v569 = vrcp.pop %v567
      %v570 = vrcp.pop %v568
      %v571 = vmul.f32 %v559, %v569
      %v572 = vmul.f32 %v560, %v570
      %v575 = vrot.slane %v571, 7
      %v576 = vrot.slane %v572, 7
      %v577 = vsel %vm255, %v575, %v576
      %v580 = vsel %vm255, 0.0, %v575
      %v581 = vsel %vm255, %v576, 0.0
      %v582 = vld [vmem:[%s4] sm:$0x1]
      %v583 = vld [vmem:[%s3] sm:$0xff]
      %v584 = vld [vmem:[%s3 + $0x8] sm:$0xff]
      %v585 = vld [vmem:[%s3 + $0x10] sm:$0xff]
      %v586 = vld [vmem:[%s3 + $0x18] sm:$0xff]
      %vm587 = vcmask 261120
      %v589 = vsel %vm587, %v580, 0
      %v591 = vsel %vm587, %v577, 0
      %593 = vmatprep.subr.mxu0 0.0
      %594 = vmatpush1.msra.mxu0 %v583
      %595 = vmatprep.subr.mxu0 0.0
      %596 = vmatpush1.msra.mxu0 %v584
      %597 = vmatprep.subr.mxu0 0.0
      %598 = vmatpush1.msra.mxu0 %v585
      %599 = vmatprep.subr.mxu0 0.0
      %600 = vmatpush1.msra.mxu0 %v586
      %601 = vmatprep.subr.mxu0 0.0
      %602 = vmatpush1.msra.mxu0 0.0
      %603 = vmatprep.subr.mxu0 0.0
      %604 = vmatpush1.msra.mxu0 0.0
      %605 = vmatprep.subr.mxu0 0.0
      %606 = vmatpush1.msra.mxu0 0.0
      %607 = vmatprep.subr.mxu0 0.0
      %608 = vmatpush1.msra.mxu0 0.0
      %609 = vmatprep.subr.mxu0 0.0
      %610 = vmatpush1.msra.mxu0 0.0
      %611 = vmatprep.subr.mxu0 0.0
      %612 = vmatpush1.msra.mxu0 0.0
      %613 = vmatprep.subr.mxu0 0.0
      %614 = vmatpush1.msra.mxu0 0.0
      %615 = vmatprep.subr.mxu0 0.0
      %616 = vmatpush1.msra.mxu0 0.0
      %617 = vmatprep.subr.mxu0 0.0
      %618 = vmatpush1.msra.mxu0 0.0
      %619 = vmatprep.subr.mxu0 0.0
      %620 = vmatpush1.msra.mxu0 0.0
      %621 = vmatprep.subr.mxu0 0.0
      %622 = vmatpush1.msra.mxu0 0.0
      %623 = vmatprep.subr.mxu0 0.0
      %624 = vmatpush1.msra.mxu0 0.0
      %625 = vmatprep.subr.mxu0 0.0
      %626 = vmatpush1.msra.mxu0 0.0
      %627 = vmatprep.subr.mxu0 0.0
      %628 = vmatpush1.msra.mxu0 0.0
      %629 = vmatprep.subr.mxu0 0.0
      %630 = vmatpush1.msra.mxu0 0.0
      %631 = vmatprep.subr.mxu0 0.0
      %632 = vmatpush1.msra.mxu0 0.0
      %633 = vmatprep.subr.mxu0 0.0
      %634 = vmatpush1.msra.mxu0 0.0
      %635 = vmatprep.subr.mxu0 0.0
      %636 = vmatpush1.msra.mxu0 0.0
      %637 = vmatprep.subr.mxu0 0.0
      %638 = vmatpush1.msra.mxu0 0.0
      %639 = vmatprep.subr.mxu0 0.0
      %640 = vmatpush1.msra.mxu0 0.0
      %641 = vmatprep.subr.mxu0 0.0
      %642 = vmatpush1.msra.mxu0 0.0
      %643 = vmatprep.subr.mxu0 0.0
      %644 = vmatpush1.msra.mxu0 0.0
      %645 = vmatprep.subr.mxu0 0.0
      %646 = vmatpush1.msra.mxu0 0.0
      %647 = vmatprep.subr.mxu0 0.0
      %648 = vmatpush1.msra.mxu0 0.0
      %649 = vmatprep.subr.mxu0 0.0
      %650 = vmatpush1.msra.mxu0 0.0
      %651 = vmatprep.subr.mxu0 0.0
      %652 = vmatpush1.msra.mxu0 0.0
      %653 = vmatprep.subr.mxu0 0.0
      %654 = vmatpush1.msra.mxu0 0.0
      %655 = vmatprep.subr.mxu0 0.0
      %656 = vmatpush1.msra.mxu0 0.0
      %657 = vmatprep.mubr.f32.mxu0 0.0
      %658 = vmatmul.mubr.f32.gmra.mrb[0].mxu0 %v589
      %v659 = vpop.f32.mrb[0].mxu0
      %v660 = vadd.f32 0.0, %v659
      %v661 = vpop.f32.mrb[0].mxu0
      %662 = vmatprep.mubr.f32.mxu0 0.0
      %663 = vmatmul.mubr.f32.gmra.mrb[0].mxu0 %v591
      %v664 = vpop.f32.mrb[0].mxu0
      %v665 = vadd.f32 0.0, %v664
      %v666 = vpop.f32.mrb[0].mxu0
      %667 = vdwg.mxu0
      %v669 = vlaneseq
      %v670 = vshrl.u32 %v669, 7
      %v671 = vsub.s32 0, %v670
      %v672 = vrot.slane %v582, %v671
      %v674 = vadd.f32 %v672, %v660
      %v675 = vadd.f32 %v672, %v665
      %s676 = scalar_lea.vmem %s3, 32
      %v677 = vld [vmem:[%s676] sm:$0xff]
      %v678 = vld [vmem:[%s676 + $0x8] sm:$0xff]
      %v679 = vld [vmem:[%s676 + $0x10] sm:$0xff]
      %v680 = vld [vmem:[%s676 + $0x18] sm:$0xff]
      %v682 = vrot.slane %v580, 1
      %v683 = vrot.slane %v577, 1
      %v684 = vsel %vm373, %v682, %v683
      %v685 = vrot.slane %v581, 1
      %v686 = vsel %vm373, %v683, %v685
      %v687 = vsel %vm587, %v684, 0
      %v689 = vsel %vm587, %v686, 0
      %691 = vmatprep.subr.mxu0 0.0
      %692 = vmatpush1.msra.mxu0 %v677
      %693 = vmatprep.subr.mxu0 0.0
      %694 = vmatpush1.msra.mxu0 %v678
      %695 = vmatprep.subr.mxu0 0.0
      %696 = vmatpush1.msra.mxu0 %v679
      %697 = vmatprep.subr.mxu0 0.0
      %698 = vmatpush1.msra.mxu0 %v680
      %699 = vmatprep.subr.mxu0 0.0
      %700 = vmatpush1.msra.mxu0 0.0
      %701 = vmatprep.subr.mxu0 0.0
      %702 = vmatpush1.msra.mxu0 0.0
      %703 = vmatprep.subr.mxu0 0.0
      %704 = vmatpush1.msra.mxu0 0.0
      %705 = vmatprep.subr.mxu0 0.0
      %706 = vmatpush1.msra.mxu0 0.0
      %707 = vmatprep.subr.mxu0 0.0
      %708 = vmatpush1.msra.mxu0 0.0
      %709 = vmatprep.subr.mxu0 0.0
      %710 = vmatpush1.msra.mxu0 0.0
      %711 = vmatprep.subr.mxu0 0.0
      %712 = vmatpush1.msra.mxu0 0.0
      %713 = vmatprep.subr.mxu0 0.0
      %714 = vmatpush1.msra.mxu0 0.0
      %715 = vmatprep.subr.mxu0 0.0
      %716 = vmatpush1.msra.mxu0 0.0
      %717 = vmatprep.subr.mxu0 0.0
      %718 = vmatpush1.msra.mxu0 0.0
      %719 = vmatprep.subr.mxu0 0.0
      %720 = vmatpush1.msra.mxu0 0.0
      %721 = vmatprep.subr.mxu0 0.0
      %722 = vmatpush1.msra.mxu0 0.0
      %723 = vmatprep.subr.mxu0 0.0
      %724 = vmatpush1.msra.mxu0 0.0
      %725 = vmatprep.subr.mxu0 0.0
      %726 = vmatpush1.msra.mxu0 0.0
      %727 = vmatprep.subr.mxu0 0.0
      %728 = vmatpush1.msra.mxu0 0.0
      %729 = vmatprep.subr.mxu0 0.0
      %730 = vmatpush1.msra.mxu0 0.0
      %731 = vmatprep.subr.mxu0 0.0
      %732 = vmatpush1.msra.mxu0 0.0
      %733 = vmatprep.subr.mxu0 0.0
      %734 = vmatpush1.msra.mxu0 0.0
      %735 = vmatprep.subr.mxu0 0.0
      %736 = vmatpush1.msra.mxu0 0.0
      %737 = vmatprep.subr.mxu0 0.0
      %738 = vmatpush1.msra.mxu0 0.0
      %739 = vmatprep.subr.mxu0 0.0
      %740 = vmatpush1.msra.mxu0 0.0
      %741 = vmatprep.subr.mxu0 0.0
      %742 = vmatpush1.msra.mxu0 0.0
      %743 = vmatprep.subr.mxu0 0.0
      %744 = vmatpush1.msra.mxu0 0.0
      %745 = vmatprep.subr.mxu0 0.0
      %746 = vmatpush1.msra.mxu0 0.0
      %747 = vmatprep.subr.mxu0 0.0
      %748 = vmatpush1.msra.mxu0 0.0
      %749 = vmatprep.subr.mxu0 0.0
      %750 = vmatpush1.msra.mxu0 0.0
      %751 = vmatprep.subr.mxu0 0.0
      %752 = vmatpush1.msra.mxu0 0.0
      %753 = vmatprep.subr.mxu0 0.0
      %754 = vmatpush1.msra.mxu0 0.0
      %755 = vmatprep.mubr.f32.mxu0 0.0
      %756 = vmatmul.mubr.f32.gmra.mrb[0].mxu0 %v687
      %v757 = vpop.f32.mrb[0].mxu0
      %v758 = vadd.f32 0.0, %v757
      %v759 = vpop.f32.mrb[0].mxu0
      %760 = vmatprep.mubr.f32.mxu0 0.0
      %761 = vmatmul.mubr.f32.gmra.mrb[0].mxu0 %v689
      %v762 = vpop.f32.mrb[0].mxu0
      %v763 = vadd.f32 0.0, %v762
      %v764 = vpop.f32.mrb[0].mxu0
      %765 = vdwg.mxu0
      %v766 = vadd.f32 %v674, %v758
      %v767 = vadd.f32 %v675, %v763
      %s768 = scalar_lea.vmem %s3, 64
      %v769 = vld [vmem:[%s768] sm:$0xff]
      %v770 = vld [vmem:[%s768 + $0x8] sm:$0xff]
      %v771 = vld [vmem:[%s768 + $0x10] sm:$0xff]
      %v772 = vld [vmem:[%s768 + $0x18] sm:$0xff]
      %v773 = vrot.slane %v580, 2
      %v774 = vrot.slane %v577, 2
      %v775 = vsel %vm471, %v773, %v774
      %v776 = vrot.slane %v581, 2
      %v777 = vsel %vm471, %v774, %v776
      %v778 = vsel %vm587, %v775, 0
      %v780 = vsel %vm587, %v777, 0
      %782 = vmatprep.subr.mxu0 0.0
      %783 = vmatpush1.msra.mxu0 %v769
      %784 = vmatprep.subr.mxu0 0.0
      %785 = vmatpush1.msra.mxu0 %v770
      %786 = vmatprep.subr.mxu0 0.0
      %787 = vmatpush1.msra.mxu0 %v771
      %788 = vmatprep.subr.mxu0 0.0
      %789 = vmatpush1.msra.mxu0 %v772
      %790 = vmatprep.subr.mxu0 0.0
      %791 = vmatpush1.msra.mxu0 0.0
      %792 = vmatprep.subr.mxu0 0.0
      %793 = vmatpush1.msra.mxu0 0.0
      %794 = vmatprep.subr.mxu0 0.0
      %795 = vmatpush1.msra.mxu0 0.0
      %796 = vmatprep.subr.mxu0 0.0
      %797 = vmatpush1.msra.mxu0 0.0
      %798 = vmatprep.subr.mxu0 0.0
      %799 = vmatpush1.msra.mxu0 0.0
      %800 = vmatprep.subr.mxu0 0.0
      %801 = vmatpush1.msra.mxu0 0.0
      %802 = vmatprep.subr.mxu0 0.0
      %803 = vmatpush1.msra.mxu0 0.0
      %804 = vmatprep.subr.mxu0 0.0
      %805 = vmatpush1.msra.mxu0 0.0
      %806 = vmatprep.subr.mxu0 0.0
      %807 = vmatpush1.msra.mxu0 0.0
      %808 = vmatprep.subr.mxu0 0.0
      %809 = vmatpush1.msra.mxu0 0.0
      %810 = vmatprep.subr.mxu0 0.0
      %811 = vmatpush1.msra.mxu0 0.0
      %812 = vmatprep.subr.mxu0 0.0
      %813 = vmatpush1.msra.mxu0 0.0
      %814 = vmatprep.subr.mxu0 0.0
      %815 = vmatpush1.msra.mxu0 0.0
      %816 = vmatprep.subr.mxu0 0.0
      %817 = vmatpush1.msra.mxu0 0.0
      %818 = vmatprep.subr.mxu0 0.0
      %819 = vmatpush1.msra.mxu0 0.0
      %820 = vmatprep.subr.mxu0 0.0
      %821 = vmatpush1.msra.mxu0 0.0
      %822 = vmatprep.subr.mxu0 0.0
      %823 = vmatpush1.msra.mxu0 0.0
      %824 = vmatprep.subr.mxu0 0.0
      %825 = vmatpush1.msra.mxu0 0.0
      %826 = vmatprep.subr.mxu0 0.0
      %827 = vmatpush1.msra.mxu0 0.0
      %828 = vmatprep.subr.mxu0 0.0
      %829 = vmatpush1.msra.mxu0 0.0
      %830 = vmatprep.subr.mxu0 0.0
      %831 = vmatpush1.msra.mxu0 0.0
      %832 = vmatprep.subr.mxu0 0.0
      %833 = vmatpush1.msra.mxu0 0.0
      %834 = vmatprep.subr.mxu0 0.0
      %835 = vmatpush1.msra.mxu0 0.0
      %836 = vmatprep.subr.mxu0 0.0
      %837 = vmatpush1.msra.mxu0 0.0
      %838 = vmatprep.subr.mxu0 0.0
      %839 = vmatpush1.msra.mxu0 0.0
      %840 = vmatprep.subr.mxu0 0.0
      %841 = vmatpush1.msra.mxu0 0.0
      %842 = vmatprep.subr.mxu0 0.0
      %843 = vmatpush1.msra.mxu0 0.0
      %844 = vmatprep.subr.mxu0 0.0
      %845 = vmatpush1.msra.mxu0 0.0
      %846 = vmatprep.mubr.f32.mxu0 0.0
      %847 = vmatmul.mubr.f32.gmra.mrb[0].mxu0 %v778
      %v848 = vpop.f32.mrb[0].mxu0
      %v849 = vadd.f32 0.0, %v848
      %v850 = vpop.f32.mrb[0].mxu0
      %851 = vmatprep.mubr.f32.mxu0 0.0
      %852 = vmatmul.mubr.f32.gmra.mrb[0].mxu0 %v780
      %v853 = vpop.f32.mrb[0].mxu0
      %v854 = vadd.f32 0.0, %v853
      %v855 = vpop.f32.mrb[0].mxu0
      %856 = vdwg.mxu0
      %v857 = vadd.f32 %v766, %v849
      %v858 = vadd.f32 %v767, %v854
      %v859 = vsub.f32 0.0, %v857
      %v860 = vsub.f32 0.0, %v858
      %v861 = vmul.f32 %v859, 1.442695
      %v862 = vpow.pop %v861
      %v863 = vmul.f32 %v860, 1.442695
      %v864 = vpow.pop %v863
      %v865 = vadd.f32 %v862, 1.0
      %v866 = vadd.f32 %v864, 1.0
      %v867 = vrcp.pop %v865
      %v868 = vrcp.pop %v866
      %v869 = vmul.f32 %v857, %v867
      %v870 = vmul.f32 %v858, %v868
      %871 = vst.msk [vmem:[%s224] sm:$0xff] %vm587, %v869
      %872 = vst.msk [vmem:[%s224 + $0x8] sm:$0xff] %vm587, %v870
      %p873 = scmp.lt.s32.totalorder %s16, 1
      %s874 = scalar_select %p873, %s16, 1
      %s875 = smul.addr %s874, 2
      %s876 = smul.addr %s875, 8
      %s877 = scalar_lea.vmem %s5, %s876
      // Predicated region
      $region41: #{sebastian_down2.1} parent=39 // pred_check
        %p878 = pneg %p144
      $region42: #{sebastian_down2.1} parent=39 // pred_check_branch
        %880 = sbr.rel (%p878) target = $region44
      $region43: #{sebastian_down2.1} parent=39 // pred_region
        _
      $region44: #{sebastian_down2.1} parent=39 // pred_fallthru
        _
    $region40: #{sebastian_down2.1} parent=5 // pred_fallthru
      _
    %p881 = scmp.le.s32.totalorder 2, %s11
    // Predicated region
    $region45: #{sebastian_down2.1} parent=5 // pred_check
      %p882 = pneg %p881
    $region46: #{sebastian_down2.1} parent=5 // pred_check_branch
      %884 = sbr.rel (%p882) target = $region48
    $region47: #{sebastian_down2.1} parent=5 // pred_region
      %s885 = ssub.s32 %s11, 2
      // Predicated region
      $region49: #{sebastian_down2.1} parent=47 // pred_check
        %p886 = pneg %p150
      $region50: #{sebastian_down2.1} parent=47 // pred_check_branch
        %888 = sbr.rel (%p886) target = $region52
      $region51: #{sebastian_down2.1} parent=47 // pred_region
        %p889 = scmp.lt.s32.totalorder %s17, 1
        %s890 = scalar_select %p889, %s17, 1
        %s891 = smul.addr %s890, 2
        %s892 = smul.addr %s891, 8
        %s893 = scalar_lea.vmem %s5, %s892
      $region52: #{sebastian_down2.1} parent=47 // pred_fallthru
        _
    $region48: #{sebastian_down2.1} parent=5 // pred_fallthru
      _
  $region6: #{sebastian_down2.1} parent=0 // loop_footer
    %s15 = sadd.s32 1, %s11
  $region7: #{sebastian_down2.1} parent=0 // loop_footer_branch
    %10 = sbr.rel target = $region3
  $region8: #{sebastian_down2.1} parent=0 // loop_exit
    _

</llo_original>
